<compile_context>
chip_gen: v7x
topology: tpu7x:2x2x1
jax: 0.10.0
libtpu: 0.0.40
codegen_flags: <defaults>
</compile_context>

<pallas_src>
import functools

import jax
import jax.numpy as jnp
from jax.experimental import pallas as pl
from jax.experimental.pallas import tpu as pltpu


def _round_up(x, m):
    return (x + m - 1) // m * m


def _decoder_kernel(z_ref, w1_ref, b1_ref, w2_ref, b2_ref, out_ref):
    # Linear 1 + ReLU: native-dtype operands on the MXU, f32 accumulation.
    h = jnp.dot(z_ref[...], w1_ref[...], preferred_element_type=jnp.float32)
    h = jnp.maximum(h + b1_ref[...].astype(jnp.float32), 0.0)

    # Linear 2.  Cast activations back to the weight dtype so the MXU runs its
    # native (e.g. bf16) path; no-op when everything is f32.
    o = jnp.dot(h.astype(w2_ref.dtype), w2_ref[...],
                preferred_element_type=jnp.float32)
    x = o + b2_ref[...].astype(jnp.float32)

    # sigmoid(x) = 1 / (1 + exp(-x)): exp and reciprocal both land on the EUP.
    # approx=False keeps f32-exact results; use approx=True if tolerance allows.
    out_ref[...] = pl.reciprocal(1.0 + jnp.exp(-x), approx=False).astype(out_ref.dtype)


def decoder_forward(z, w1, b1, w2, b2, *, batch_tile=256, use_pallas=None):
    """z: (B, latentDim); w1: (latentDim, hiddenDim); b1: (1, hiddenDim);
    w2: (hiddenDim, outputDim); b2: (1, outputDim).  Returns (B, outputDim)."""
    B, L = z.shape
    H = w1.shape[1]
    O = w2.shape[1]

    # At toy sizes a custom-call launch is pure overhead -> fused XLA path,
    # unless the caller explicitly asks for the Pallas kernel.
    if use_pallas is None:
        use_pallas = B * max(H, O) >= 128 * 128
    if not use_pallas:
        h = jnp.maximum(jnp.dot(z, w1) + b1, 0.0)
        return jax.nn.sigmoid(jnp.dot(h, w2) + b2)

    # Batch tiling only.  Feature dims stay at their native sizes: a block
    # whose trailing dims equal the full array dims is legal, and it avoids
    # lane-padding the HBM-bound activation stream.
    TB = min(_round_up(batch_tile, 8), _round_up(B, 8))
    Bp = _round_up(B, TB)
    zp = z if Bp == B else jnp.pad(z, ((0, Bp - B), (0, 0)))

    grid = (Bp // TB,)

    # Weights / biases: same block every grid step -> VMEM-resident, and
    # single-buffered so they don't pay 2x VMEM (matters on v7x's 64 MiB).
    resident = pl.Buffered(1)
    in_specs = [
        pl.BlockSpec((TB, L), lambda i: (i, 0)),  # z: batch-tiled, pipelined
        pl.BlockSpec((L, H), lambda i: (0, 0), pipeline_mode=resident),
        pl.BlockSpec((1, H), lambda i: (0, 0), pipeline_mode=resident),
        pl.BlockSpec((H, O), lambda i: (0, 0), pipeline_mode=resident),
        pl.BlockSpec((1, O), lambda i: (0, 0), pipeline_mode=resident),
    ]
    out_spec = pl.BlockSpec((TB, O), lambda i: (i, 0))

    # Explicit VMEM budget with headroom (v5e default scoped VMEM = 16 MiB,
    # v7x physical = 64 MiB).
    a_item = jnp.dtype(z.dtype).itemsize
    w_item = jnp.dtype(w1.dtype).itemsize
    est = (2 * TB * L * a_item                    # z double buffer
           + (L * H + H + H * O + O) * w_item     # resident weights / biases
           + 2 * TB * O * a_item                  # out double buffer
           + TB * (H + O) * 4)                    # f32 intermediates
    vmem_limit = int(min(max(2 * est + (4 << 20), 16 << 20), 48 << 20))

    out = pl.pallas_call(
        _decoder_kernel,
        out_shape=jax.ShapeDtypeStruct((Bp, O), z.dtype),
        grid_spec=pltpu.PrefetchScalarGridSpec(
            num_scalar_prefetch=0,
            grid=grid,
            in_specs=in_specs,
            out_specs=out_spec,
        ),
        compiler_params=pltpu.CompilerParams(
            dimension_semantics=("parallel",),   # batch steps are independent
            vmem_limit_bytes=vmem_limit,
        ),
    )(zp, w1, b1, w2, b2)

    return out if Bp == B else out[:B]


def _torch_linear_init(key, fan_in, fan_out):
    """Deterministic init mimicking nn.Linear's default U(-1/sqrt(fan_in), +)."""
    kw, kb = jax.random.split(key)
    bound = 1.0 / jnp.sqrt(jnp.float32(fan_in))
    # Stored as (in, out), i.e. transpose of torch's (out, in) weight.
    w = jax.random.uniform(kw, (fan_in, fan_out), jnp.float32, -bound, bound)
    b = jax.random.uniform(kb, (1, fan_out), jnp.float32, -bound, bound)
    return w, b


def _reference(z, w1, b1, w2, b2):
    h = jnp.maximum(z @ w1 + b1, 0.0)
    return jax.nn.sigmoid(h @ w2 + b2)


if __name__ == "__main__":
    # decoderSettings = {'latentDim': 16, 'hiddenDim': 32, 'outputDim': 64}
    latent_dim, hidden_dim, output_dim = 16, 32, 64
    batch = 8

    key = jax.random.PRNGKey(0)
    kz, k1, k2 = jax.random.split(key, 3)

    z = jax.random.normal(kz, (batch, latent_dim), jnp.float32)
    w1, b1 = _torch_linear_init(k1, latent_dim, hidden_dim)
    w2, b2 = _torch_linear_init(k2, hidden_dim, output_dim)

    # Force the Pallas path so the kernel itself is exercised at this toy size.
    fwd = jax.jit(functools.partial(decoder_forward, batch_tile=256,
                                    use_pallas=True))
    out = fwd(z, w1, b1, w2, b2)
    out = jax.block_until_ready(out)

    ref = _reference(z, w1, b1, w2, b2)
    assert out.shape == (batch, output_dim)
    assert jnp.allclose(out, ref, atol=1e-5, rtol=1e-5), "mismatch vs reference"

    print("KERNEL_OK")
</pallas_src>

<mosaic_0001>
module attributes {stable_mosaic.version = 11 : i64} {
  func.func @_decoder_kernel(%arg0: i32, %arg1: memref<8x16xf32, #tpu.memory_space<vmem>>, %arg2: memref<16x32xf32, #tpu.memory_space<vmem>>, %arg3: memref<1x32xf32, #tpu.memory_space<vmem>>, %arg4: memref<32x64xf32, #tpu.memory_space<vmem>>, %arg5: memref<1x64xf32, #tpu.memory_space<vmem>>, %arg6: memref<8x64xf32, #tpu.memory_space<vmem>>) attributes {dimension_semantics = [#tpu.dimension_semantics<parallel>], iteration_bounds = array<i64: 1>, scalar_prefetch = 0 : i64, scratch_operands = 0 : i64, tpu.core_type = #tpu.core_type<tc>, window_params = [{transform_indices = @transform_0, window_bounds = array<i64: 8, 16>}, {pipeline_mode = #tpu.pipeline_mode<synchronous>, transform_indices = @transform_1, window_bounds = array<i64: 16, 32>}, {pipeline_mode = #tpu.pipeline_mode<synchronous>, transform_indices = @transform_2, window_bounds = array<i64: 1, 32>}, {pipeline_mode = #tpu.pipeline_mode<synchronous>, transform_indices = @transform_3, window_bounds = array<i64: 32, 64>}, {pipeline_mode = #tpu.pipeline_mode<synchronous>, transform_indices = @transform_4, window_bounds = array<i64: 1, 64>}, {transform_indices = @transform_5, window_bounds = array<i64: 8, 64>}]} {
    %c0 = arith.constant 0 : index
    %c0_0 = arith.constant 0 : index
    %0 = vector.load %arg1[%c0, %c0_0] : memref<8x16xf32, #tpu.memory_space<vmem>>, vector<8x16xf32>
    %c0_1 = arith.constant 0 : index
    %c0_2 = arith.constant 0 : index
    %1 = vector.load %arg2[%c0_1, %c0_2] : memref<16x32xf32, #tpu.memory_space<vmem>>, vector<16x32xf32>
    %cst = arith.constant dense<0.000000e+00> : vector<8x32xf32>
    %2 = tpu.matmul %0, %1, %cst {dimension_numbers = #tpu.dot_dimension_numbers<[1], [0], [0], [1], [0, 0, 1, 1], [], []>} : vector<8x16xf32>, vector<16x32xf32>, vector<8x32xf32> -> vector<8x32xf32>
    %c0_3 = arith.constant 0 : index
    %c0_4 = arith.constant 0 : index
    %3 = vector.load %arg3[%c0_3, %c0_4] : memref<1x32xf32, #tpu.memory_space<vmem>>, vector<1x32xf32>
    %4 = vector.broadcast %3 : vector<1x32xf32> to vector<8x32xf32>
    %5 = arith.addf %2, %4 : vector<8x32xf32>
    %cst_5 = arith.constant 0.000000e+00 : f32
    %6 = vector.broadcast %cst_5 : f32 to vector<8x32xf32>
    %7 = arith.maximumf %5, %6 : vector<8x32xf32>
    %c0_6 = arith.constant 0 : index
    %c0_7 = arith.constant 0 : index
    %8 = vector.load %arg4[%c0_6, %c0_7] : memref<32x64xf32, #tpu.memory_space<vmem>>, vector<32x64xf32>
    %cst_8 = arith.constant dense<0.000000e+00> : vector<8x64xf32>
    %9 = tpu.matmul %7, %8, %cst_8 {dimension_numbers = #tpu.dot_dimension_numbers<[1], [0], [0], [1], [0, 0, 1, 1], [], []>} : vector<8x32xf32>, vector<32x64xf32>, vector<8x64xf32> -> vector<8x64xf32>
    %c0_9 = arith.constant 0 : index
    %c0_10 = arith.constant 0 : index
    %10 = vector.load %arg5[%c0_9, %c0_10] : memref<1x64xf32, #tpu.memory_space<vmem>>, vector<1x64xf32>
    %11 = vector.broadcast %10 : vector<1x64xf32> to vector<8x64xf32>
    %12 = arith.addf %9, %11 : vector<8x64xf32>
    %cst_11 = arith.constant 0.000000e+00 : f32
    %13 = vector.broadcast %cst_11 : f32 to vector<8x64xf32>
    %14 = arith.subf %13, %12 : vector<8x64xf32>
    %15 = math.exp %14 : vector<8x64xf32>
    %cst_12 = arith.constant 1.000000e+00 : f32
    %16 = vector.broadcast %cst_12 : f32 to vector<8x64xf32>
    %17 = arith.addf %16, %15 : vector<8x64xf32>
    %18 = tpu.reciprocal %17 : vector<8x64xf32> -> vector<8x64xf32>
    %c0_13 = arith.constant 0 : index
    %c0_14 = arith.constant 0 : index
    %19 = vector.load %arg6[%c0_13, %c0_14] : memref<8x64xf32, #tpu.memory_space<vmem>>, vector<8x64xf32>
    tpu.vector_store %arg6[%c0_13, %c0_14], %18 {strides = array<i32>} : memref<8x64xf32, #tpu.memory_space<vmem>>, vector<8x64xf32>,
    return
  }
  func.func @transform_0(%arg0: i32) -> (i32, i32) {
    %c0_i32 = arith.constant 0 : i32
    %c0_i32_0 = arith.constant 0 : i32
    return %arg0, %c0_i32 : i32, i32
  }
  func.func @transform_1(%arg0: i32) -> (i32, i32) {
    %c0_i32 = arith.constant 0 : i32
    %c0_i32_0 = arith.constant 0 : i32
    %c0_i32_1 = arith.constant 0 : i32
    return %c0_i32, %c0_i32_0 : i32, i32
  }
  func.func @transform_2(%arg0: i32) -> (i32, i32) {
    %c0_i32 = arith.constant 0 : i32
    %c0_i32_0 = arith.constant 0 : i32
    %c0_i32_1 = arith.constant 0 : i32
    return %c0_i32, %c0_i32_0 : i32, i32
  }
  func.func @transform_3(%arg0: i32) -> (i32, i32) {
    %c0_i32 = arith.constant 0 : i32
    %c0_i32_0 = arith.constant 0 : i32
    %c0_i32_1 = arith.constant 0 : i32
    return %c0_i32, %c0_i32_0 : i32, i32
  }
  func.func @transform_4(%arg0: i32) -> (i32, i32) {
    %c0_i32 = arith.constant 0 : i32
    %c0_i32_0 = arith.constant 0 : i32
    %c0_i32_1 = arith.constant 0 : i32
    return %c0_i32, %c0_i32_0 : i32, i32
  }
  func.func @transform_5(%arg0: i32) -> (i32, i32) {
    %c0_i32 = arith.constant 0 : i32
    %c0_i32_0 = arith.constant 0 : i32
    return %arg0, %c0_i32 : i32, i32
  }
}

</mosaic_0001>

<llo_original>
// kernel: decoder_forward.1
$region0: #{decoder_forward.1}
  #allocation0 [shape = 'u32[]', space=smem, size = 0x4, offset = 0x4, fixed_abs, tag = 'smem constant byte address 0x4 - core index']
  #allocation1 [shape = 'u32[144,128]{1,0:T(1,128)}', space=vmem, size = 0x12000, scoped, tag = 'internal scratch']
  %s0 = inlined_call_operand.hbm [shape: f32[8,16], index: 0, kind: input, shape index: {}]
  %s1 = inlined_call_operand.hbm [shape: f32[16,32], index: 1, kind: input, shape index: {}]
  %s2 = inlined_call_operand.vmem [shape: f32[1,32], index: 2, kind: input, shape index: {}]
  %s3 = inlined_call_operand.hbm [shape: f32[32,64], index: 3, kind: input, shape index: {}]
  %s4 = inlined_call_operand.vmem [shape: f32[1,64], index: 4, kind: input, shape index: {}]
  %s5 = inlined_call_operand.hbm [shape: f32[8,64], index: 5, kind: output, shape index: {}]
  %s6 = sld [smem:[#allocation0]]
  $region42: #{decoder_forward.1} parent=0
    _
  %s8 = ssub.s32 1, %s6
  %s9 = scalar_select 0, %s8, %s6
  $region1: #{decoder_forward.1} parent=0
    #allocation2 [shape = 'u8[4096]{0}', space=vmem, size = 0x1000, scoped, tag = 'input window, operand 0, single buffered']
    #allocation3 [shape = 's32[1]{0}', space=sflag, size = 0x4, scoped, tag = 'scoped memory for decoder_forward.1']
    #allocation4 [shape = 's32[1]{0}', space=sflag, size = 0x4, scoped, tag = 'scoped memory for decoder_forward.1']
    #allocation5 [shape = 'u8[8192]{0}', space=vmem, size = 0x2000, scoped, tag = 'input window, operand 1, single buffered']
    #allocation6 [shape = 's32[1]{0}', space=sflag, size = 0x4, scoped, tag = 'scoped memory for decoder_forward.1']
    #allocation7 [shape = 'u8[16384]{0}', space=vmem, size = 0x4000, scoped, tag = 'input window, operand 3, single buffered']
    #allocation8 [shape = 'u8[4096]{0}', space=vmem, size = 0x1000, scoped, tag = 'output window, operand 0, single buffered']
    %10 = vsyncpa [#allocation3], 0
    %11 = vsyncpa [#allocation6], 0
    %12 = vsyncpa [#allocation4], 0
    // Predicated region
    $region2: #{decoder_forward.1} parent=1 // pred_check
      _
    $region3: #{decoder_forward.1} parent=1 // pred_check_branch
      %14 = sbr.rel (0) target = $region5
    $region4: #{decoder_forward.1} parent=1 // pred_region
      %s16 = ssub.s32 128, 128
      %17 = vsyncadd [#allocation3], %s16
      %s19 = sshll.u32 [#allocation2], 4
      %s20 = int_to_ptr.vmem [resolvable:$true] %s19
      %22 = dma.hbm_to_vmem [thread:$0]  %s0, 128, %s20, [#allocation3]
    $region5: #{decoder_forward.1} parent=1 // pred_fallthru
      _
    // Predicated region
    $region6: #{decoder_forward.1} parent=1 // pred_check
      _
    $region7: #{decoder_forward.1} parent=1 // pred_check_branch
      %24 = sbr.rel (0) target = $region9
    $region8: #{decoder_forward.1} parent=1 // pred_region
      %s26 = ssub.s32 256, 256
      %27 = vsyncadd [#allocation6], %s26
      %s28 = sshll.u32 [#allocation5], 4
      %s29 = int_to_ptr.vmem [resolvable:$true] %s28
      %34 = dma.hbm_to_vmem [thread:$0]  %s1, 256, %s29, [#allocation6], 128, 128, 8
    $region9: #{decoder_forward.1} parent=1 // pred_fallthru
      _
    // Predicated region
    $region10: #{decoder_forward.1} parent=1 // pred_check
      _
    $region11: #{decoder_forward.1} parent=1 // pred_check_branch
      %36 = sbr.rel (0) target = $region13
    $region12: #{decoder_forward.1} parent=1 // pred_region
      _
    $region13: #{decoder_forward.1} parent=1 // pred_fallthru
      _
    // Predicated region
    $region14: #{decoder_forward.1} parent=1 // pred_check
      _
    $region15: #{decoder_forward.1} parent=1 // pred_check_branch
      %38 = sbr.rel (0) target = $region17
    $region16: #{decoder_forward.1} parent=1 // pred_region
      %s40 = ssub.s32 512, 512
      %41 = vsyncadd [#allocation6], %s40
      %s42 = sshll.u32 [#allocation7], 4
      %s43 = int_to_ptr.vmem [resolvable:$true] %s42
      %48 = dma.hbm_to_vmem [thread:$0]  %s3, 512, %s43, [#allocation6], 128, 128, 8
    $region17: #{decoder_forward.1} parent=1 // pred_fallthru
      _
    // Predicated region
    $region18: #{decoder_forward.1} parent=1 // pred_check
      _
    $region19: #{decoder_forward.1} parent=1 // pred_check_branch
      %50 = sbr.rel (0) target = $region21
    $region20: #{decoder_forward.1} parent=1 // pred_region
      _
    $region21: #{decoder_forward.1} parent=1 // pred_fallthru
      _
    // Predicated region
    $region22: #{decoder_forward.1} parent=1 // pred_check
      _
    $region23: #{decoder_forward.1} parent=1 // pred_check_branch
      %52 = sbr.rel (0) target = $region25
    $region24: #{decoder_forward.1} parent=1 // pred_region
      %53 = dma.done [#allocation3], 128
    $region25: #{decoder_forward.1} parent=1 // pred_fallthru
      _
    // Predicated region
    $region26: #{decoder_forward.1} parent=1 // pred_check
      _
    $region27: #{decoder_forward.1} parent=1 // pred_check_branch
      %55 = sbr.rel (0) target = $region29
    $region28: #{decoder_forward.1} parent=1 // pred_region
      %56 = dma.done [#allocation6], 256
    $region29: #{decoder_forward.1} parent=1 // pred_fallthru
      _
    // Predicated region
    $region30: #{decoder_forward.1} parent=1 // pred_check
      _
    $region31: #{decoder_forward.1} parent=1 // pred_check_branch
      %58 = sbr.rel (0) target = $region33
    $region32: #{decoder_forward.1} parent=1 // pred_region
      %59 = dma.done [#allocation6], 512
    $region33: #{decoder_forward.1} parent=1 // pred_fallthru
      _
    %v60 = vld [vmem:[#allocation2] sm:$0xff]
    %v61 = vld [vmem:[#allocation5] sm:$0xff]
    %v62 = vld [vmem:[#allocation5 + $0x8] sm:$0xff]
    %v63 = vld [vmem:[%s2] sm:$0x1]
    %v65 = vlaneseq
    %v66 = vshrl.u32 %v65, 7
    %v67 = vsub.s32 0, %v66
    %v68 = vrot.slane %v63, %v67
    %vm70 = vcmask 130048
    %v72 = vsel %vm70, %v60, 0
    %74 = vmatprep.subr.mxu0 0.0
    %75 = vmatpush1.msra.mxu0 %v61
    %76 = vmatprep.subr.mxu0 0.0
    %77 = vmatpush1.msra.mxu0 %v62
    %78 = vmatprep.subr.mxu0 0.0
    %79 = vmatpush1.msra.mxu0 0.0
    %80 = vmatprep.subr.mxu0 0.0
    %81 = vmatpush1.msra.mxu0 0.0
    %82 = vmatprep.subr.mxu0 0.0
    %83 = vmatpush1.msra.mxu0 0.0
    %84 = vmatprep.subr.mxu0 0.0
    %85 = vmatpush1.msra.mxu0 0.0
    %86 = vmatprep.subr.mxu0 0.0
    %87 = vmatpush1.msra.mxu0 0.0
    %88 = vmatprep.subr.mxu0 0.0
    %89 = vmatpush1.msra.mxu0 0.0
    %90 = vmatprep.subr.mxu0 0.0
    %91 = vmatpush1.msra.mxu0 0.0
    %92 = vmatprep.subr.mxu0 0.0
    %93 = vmatpush1.msra.mxu0 0.0
    %94 = vmatprep.subr.mxu0 0.0
    %95 = vmatpush1.msra.mxu0 0.0
    %96 = vmatprep.subr.mxu0 0.0
    %97 = vmatpush1.msra.mxu0 0.0
    %98 = vmatprep.subr.mxu0 0.0
    %99 = vmatpush1.msra.mxu0 0.0
    %100 = vmatprep.subr.mxu0 0.0
    %101 = vmatpush1.msra.mxu0 0.0
    %102 = vmatprep.subr.mxu0 0.0
    %103 = vmatpush1.msra.mxu0 0.0
    %104 = vmatprep.subr.mxu0 0.0
    %105 = vmatpush1.msra.mxu0 0.0
    %106 = vmatprep.subr.mxu0 0.0
    %107 = vmatpush1.msra.mxu0 0.0
    %108 = vmatprep.subr.mxu0 0.0
    %109 = vmatpush1.msra.mxu0 0.0
    %110 = vmatprep.subr.mxu0 0.0
    %111 = vmatpush1.msra.mxu0 0.0
    %112 = vmatprep.subr.mxu0 0.0
    %113 = vmatpush1.msra.mxu0 0.0
    %114 = vmatprep.subr.mxu0 0.0
    %115 = vmatpush1.msra.mxu0 0.0
    %116 = vmatprep.subr.mxu0 0.0
    %117 = vmatpush1.msra.mxu0 0.0
    %118 = vmatprep.subr.mxu0 0.0
    %119 = vmatpush1.msra.mxu0 0.0
    %120 = vmatprep.subr.mxu0 0.0
    %121 = vmatpush1.msra.mxu0 0.0
    %122 = vmatprep.subr.mxu0 0.0
    %123 = vmatpush1.msra.mxu0 0.0
    %124 = vmatprep.subr.mxu0 0.0
    %125 = vmatpush1.msra.mxu0 0.0
    %126 = vmatprep.subr.mxu0 0.0
    %127 = vmatpush1.msra.mxu0 0.0
    %128 = vmatprep.subr.mxu0 0.0
    %129 = vmatpush1.msra.mxu0 0.0
    %130 = vmatprep.subr.mxu0 0.0
    %131 = vmatpush1.msra.mxu0 0.0
    %132 = vmatprep.subr.mxu0 0.0
    %133 = vmatpush1.msra.mxu0 0.0
    %134 = vmatprep.subr.mxu0 0.0
    %135 = vmatpush1.msra.mxu0 0.0
    %136 = vmatprep.subr.mxu0 0.0
    %137 = vmatpush1.msra.mxu0 0.0
    %138 = vmatprep.mubr.f32.mxu0 0.0
    %139 = vmatmul.mubr.f32.gmra.mrb[0].mxu0 %v72
    %v140 = vpop.f32.mrb[0].mxu0
    %v141 = vadd.f32 %v68, %v140
    %v142 = vpop.f32.mrb[0].mxu0
    %143 = vdwg.mxu0
    %v144 = vmax.f32 %v141, 0.0
    %v145 = vld [vmem:[#allocation7] sm:$0xff]
    %v146 = vld [vmem:[#allocation7 + $0x8] sm:$0xff]
    %v147 = vld [vmem:[#allocation7 + $0x10] sm:$0xff]
    %v148 = vld [vmem:[#allocation7 + $0x18] sm:$0xff]
    %v149 = vld [vmem:[%s4] sm:$0x1]
    %v151 = vlaneseq
    %v152 = vshrl.u32 %v151, 7
    %v153 = vsub.s32 0, %v152
    %v154 = vrot.slane %v149, %v153
    %vm156 = vcmask 261120
    %v158 = vsel %vm156, %v144, 0
    %160 = vmatprep.subr.mxu0 0.0
    %161 = vmatpush1.msra.mxu0 %v145
    %162 = vmatprep.subr.mxu0 0.0
    %163 = vmatpush1.msra.mxu0 %v146
    %164 = vmatprep.subr.mxu0 0.0
    %165 = vmatpush1.msra.mxu0 %v147
    %166 = vmatprep.subr.mxu0 0.0
    %167 = vmatpush1.msra.mxu0 %v148
    %168 = vmatprep.subr.mxu0 0.0
    %169 = vmatpush1.msra.mxu0 0.0
    %170 = vmatprep.subr.mxu0 0.0
    %171 = vmatpush1.msra.mxu0 0.0
    %172 = vmatprep.subr.mxu0 0.0
    %173 = vmatpush1.msra.mxu0 0.0
    %174 = vmatprep.subr.mxu0 0.0
    %175 = vmatpush1.msra.mxu0 0.0
    %176 = vmatprep.subr.mxu0 0.0
    %177 = vmatpush1.msra.mxu0 0.0
    %178 = vmatprep.subr.mxu0 0.0
    %179 = vmatpush1.msra.mxu0 0.0
    %180 = vmatprep.subr.mxu0 0.0
    %181 = vmatpush1.msra.mxu0 0.0
    %182 = vmatprep.subr.mxu0 0.0
    %183 = vmatpush1.msra.mxu0 0.0
    %184 = vmatprep.subr.mxu0 0.0
    %185 = vmatpush1.msra.mxu0 0.0
    %186 = vmatprep.subr.mxu0 0.0
    %187 = vmatpush1.msra.mxu0 0.0
    %188 = vmatprep.subr.mxu0 0.0
    %189 = vmatpush1.msra.mxu0 0.0
    %190 = vmatprep.subr.mxu0 0.0
    %191 = vmatpush1.msra.mxu0 0.0
    %192 = vmatprep.subr.mxu0 0.0
    %193 = vmatpush1.msra.mxu0 0.0
    %194 = vmatprep.subr.mxu0 0.0
    %195 = vmatpush1.msra.mxu0 0.0
    %196 = vmatprep.subr.mxu0 0.0
    %197 = vmatpush1.msra.mxu0 0.0
    %198 = vmatprep.subr.mxu0 0.0
    %199 = vmatpush1.msra.mxu0 0.0
    %200 = vmatprep.subr.mxu0 0.0
    %201 = vmatpush1.msra.mxu0 0.0
    %202 = vmatprep.subr.mxu0 0.0
    %203 = vmatpush1.msra.mxu0 0.0
    %204 = vmatprep.subr.mxu0 0.0
    %205 = vmatpush1.msra.mxu0 0.0
    %206 = vmatprep.subr.mxu0 0.0
    %207 = vmatpush1.msra.mxu0 0.0
    %208 = vmatprep.subr.mxu0 0.0
    %209 = vmatpush1.msra.mxu0 0.0
    %210 = vmatprep.subr.mxu0 0.0
    %211 = vmatpush1.msra.mxu0 0.0
    %212 = vmatprep.subr.mxu0 0.0
    %213 = vmatpush1.msra.mxu0 0.0
    %214 = vmatprep.subr.mxu0 0.0
    %215 = vmatpush1.msra.mxu0 0.0
    %216 = vmatprep.subr.mxu0 0.0
    %217 = vmatpush1.msra.mxu0 0.0
    %218 = vmatprep.subr.mxu0 0.0
    %219 = vmatpush1.msra.mxu0 0.0
    %220 = vmatprep.subr.mxu0 0.0
    %221 = vmatpush1.msra.mxu0 0.0
    %222 = vmatprep.subr.mxu0 0.0
    %223 = vmatpush1.msra.mxu0 0.0
    %224 = vmatprep.mubr.f32.mxu0 0.0
    %225 = vmatmul.mubr.f32.gmra.mrb[0].mxu0 %v158
    %v226 = vpop.f32.mrb[0].mxu0
    %v227 = vadd.f32 %v154, %v226
    %v228 = vpop.f32.mrb[0].mxu0
    %229 = vdwg.mxu0
    %v230 = vsub.f32 0.0, %v227
    %v231 = vmul.f32 %v230, 1.442695
    %v232 = vpow.pop %v231
    %v233 = vadd.f32 %v232, 1.0
    %v234 = vrcp.pop %v233
    %vm235 = vcmask 523264
    %236 = vst.msk [vmem:[#allocation8] sm:$0xff] %vm235, %v234
    // Predicated region
    $region34: #{decoder_forward.1} parent=1 // pred_check
      _
    $region35: #{decoder_forward.1} parent=1 // pred_check_branch
      %238 = sbr.rel (0) target = $region37
    $region36: #{decoder_forward.1} parent=1 // pred_region
      %s240 = ssub.s32 128, 128
      %241 = vsyncadd [#allocation4], %s240
      %s243 = sshll.u32 [#allocation8], 4
      %s244 = int_to_ptr.vmem [resolvable:$true] %s243
      %246 = dma.vmem_to_hbm [thread:$0]  %s244, 128, %s5, [#allocation4]
    $region37: #{decoder_forward.1} parent=1 // pred_fallthru
      _
    // Predicated region
    $region38: #{decoder_forward.1} parent=1 // pred_check
      _
    $region39: #{decoder_forward.1} parent=1 // pred_check_branch
      %248 = sbr.rel (0) target = $region41
    $region40: #{decoder_forward.1} parent=1 // pred_region
      %249 = dma.done [#allocation4], 128
    $region41: #{decoder_forward.1} parent=1 // pred_fallthru
      _
    %250 = vsyncpa [#allocation3], 1
    %251 = vsyncpa [#allocation6], 1
    %252 = vsyncpa [#allocation4], 1

</llo_original>
